<compile_context>
chip_gen: v7x
topology: tpu7x:2x2x1
jax: 0.10.0
libtpu: 0.0.40
codegen_flags: <defaults>
</compile_context>

<pallas_src>
import functools

import jax
import jax.numpy as jnp
from jax.experimental import pallas as pl
from jax.experimental.pallas import tpu as pltpu

_LANES = 128
_SUBLANES = 8
_NUM_MOMENTS = 5                      # Sum p, Sum g, Sum p^2, Sum g^2, Sum p*g
_CORE_SPLIT = 2                       # leading "parallel" grid axis (v7x: 2 TCs)
_DEFAULT_MAX_TILE_ROWS = 4096         # (4096,128) f32 = 2 MiB/block -> 8 MiB pipelined
_MIN_KERNEL_ELEMS = 1 << 19           # ~512K elems; below this the XLA fallback wins


def _round_up(x: int, m: int) -> int:
    return (x + m - 1) // m * m


def _moments_kernel(shift_ref, p_ref, g_ref, out_ref, *,
                    n_true: int, tile_rows: int, blocks_per_core: int):
    """Accumulate 5 raw moments of the (pilot-shifted) streams into out_ref."""
    core = pl.program_id(0)
    step = pl.program_id(1)

    @pl.when(step == 0)
    def _init():
        out_ref[...] = jnp.zeros_like(out_ref)

    # Logical (unclamped) tile index. Tiles whose index_map was clamped at the
    # grid tail are fully masked below (their element indices are >= n_true).
    t = core * blocks_per_core + step

    # In-kernel widening cast (stream native dtype from HBM) + pilot shift.
    p = p_ref[...].astype(jnp.float32) - shift_ref[0]
    g = g_ref[...].astype(jnp.float32) - shift_ref[1]

    # Mask everything past the true element count (ragged last block garbage,
    # clamped duplicate blocks, and any 128-boundary zero padding).
    row_ids = jax.lax.broadcasted_iota(jnp.int32, (tile_rows, _LANES), 0)
    lane_ids = jax.lax.broadcasted_iota(jnp.int32, (tile_rows, _LANES), 1)
    elem = (t * tile_rows + row_ids) * _LANES + lane_ids
    valid = elem < n_true
    p = jnp.where(valid, p, 0.0)
    g = jnp.where(valid, g, 0.0)

    groups = tile_rows // _SUBLANES
    ps = p.reshape(groups, _SUBLANES, _LANES)   # layout-compatible major-dim split
    gs = g.reshape(groups, _SUBLANES, _LANES)

    # VPU-only partial sums into vreg-shaped (8,128) slabs; one fused RMW.
    upd = jnp.concatenate(
        [jnp.sum(ps, axis=0),                   # Sum p'
         jnp.sum(gs, axis=0),                   # Sum g'
         jnp.sum(ps * ps, axis=0),              # Sum p'^2
         jnp.sum(gs * gs, axis=0),              # Sum g'^2
         jnp.sum(ps * gs, axis=0)],             # Sum p'*g'
        axis=0)                                 # (40, 128)
    out_ref[...] += upd


def _ccc_loss_pallas(prediction, ground_truth, *, max_tile_rows=_DEFAULT_MAX_TILE_ROWS):
    n = prediction.shape[0]
    rows = -(-n // _LANES)
    n128 = rows * _LANES

    p, g = prediction, ground_truth
    if n128 != n:
        # Minimal pad (< 128 elems of zeros) so the 2-D reshape is valid;
        # the padded region is masked in-kernel anyway.
        p = jnp.pad(p, (0, n128 - n))
        g = jnp.pad(g, (0, n128 - n))
    p2 = p.reshape(rows, _LANES)        # metadata-only reshape (free)
    g2 = g.reshape(rows, _LANES)

    # Sublane alignment for packed sub-32-bit dtypes (bf16/f16 -> 16 rows).
    itemsize = min(p2.dtype.itemsize, g2.dtype.itemsize)
    row_align = _SUBLANES * max(1, 4 // itemsize)

    tile_rows = min(_round_up(max_tile_rows, row_align),
                    _round_up(-(-rows // _CORE_SPLIT), row_align))
    num_blocks = -(-rows // tile_rows)
    blocks_per_core = -(-num_blocks // _CORE_SPLIT)

    # Pilot shift = first element of each stream (cheap scalar read on device).
    shifts = jnp.stack([prediction[0].astype(jnp.float32),
                        ground_truth[0].astype(jnp.float32)])

    def in_map(c, i):
        t = jnp.minimum(c * blocks_per_core + i, num_blocks - 1)
        return (t, 0)

    kernel = functools.partial(_moments_kernel, n_true=n,
                               tile_rows=tile_rows,
                               blocks_per_core=blocks_per_core)

    out_elems = _CORE_SPLIT * _NUM_MOMENTS * _SUBLANES * _LANES
    cost = pl.CostEstimate(
        flops=10 * n,
        transcendentals=0,
        bytes_accessed=n * (prediction.dtype.itemsize + ground_truth.dtype.itemsize)
                       + out_elems * 4 + 8)

    partial = pl.pallas_call(
        kernel,
        out_shape=jax.ShapeDtypeStruct(
            (_CORE_SPLIT, _NUM_MOMENTS * _SUBLANES, _LANES), jnp.float32),
        grid_spec=pltpu.PrefetchScalarGridSpec(
            num_scalar_prefetch=0,
            grid=(_CORE_SPLIT, blocks_per_core),
            in_specs=[
                pl.BlockSpec(memory_space=pltpu.MemorySpace.SMEM),   # shifts (2,)
                pl.BlockSpec((tile_rows, _LANES), in_map),
                pl.BlockSpec((tile_rows, _LANES), in_map),
            ],
            out_specs=pl.BlockSpec((None, _NUM_MOMENTS * _SUBLANES, _LANES),
                                   lambda c, i: (c, 0, 0)),
        ),
        compiler_params=pltpu.CompilerParams(
            dimension_semantics=("parallel", "arbitrary"),
            vmem_limit_bytes=32 * 1024 * 1024),
        cost_estimate=cost,
    )(shifts, p2, g2)

    # Combine per-core / per-lane partials; finalize scalar CCC (XLA-fused, tiny).
    m = partial.reshape(_CORE_SPLIT, _NUM_MOMENTS, _SUBLANES, _LANES).sum(axis=(0, 2, 3))
    s_p, s_g, s_pp, s_gg, s_pg = m[0], m[1], m[2], m[3], m[4]

    n_f = jnp.float32(n)
    nm1 = jnp.float32(n - 1)
    mean_ps = s_p / n_f                      # means of the SHIFTED streams
    mean_gs = s_g / n_f
    svp2 = s_pp - s_p * mean_ps              # Sum (p - mean_p)^2  (shift-invariant)
    svg2 = s_gg - s_g * mean_gs              # Sum (g - mean_g)^2
    svpg = s_pg - s_p * mean_gs              # Sum (p - mean_p)(g - mean_g)
    var_p = svp2 / nm1                       # torch.var / std are unbiased
    var_g = svg2 / nm1
    numerator = 2.0 * svpg / nm1             # == 2 * cor * sd_p * sd_g
    mean_diff = (shifts[1] - shifts[0]) + (mean_gs - mean_ps)   # mean_g - mean_p
    denominator = var_g + var_p + mean_diff * mean_diff
    # NOTE: if both inputs are constant, denominator == 0 -> NaN/Inf, exactly
    # like the PyTorch module.
    return 1.0 - numerator / denominator


def _ccc_loss_ref(prediction, ground_truth):
    """Pure-JAX reference mirroring the PyTorch module (two-pass, centered)."""
    p = prediction.astype(jnp.float32)
    g = ground_truth.astype(jnp.float32)
    mean_g = jnp.mean(g, axis=0)
    mean_p = jnp.mean(p, axis=0)
    var_g = jnp.var(g, axis=0, ddof=1)
    var_p = jnp.var(p, axis=0, ddof=1)
    vp = p - mean_p
    vg = g - mean_g
    cor = jnp.sum(vp * vg) / (jnp.sqrt(jnp.sum(vp ** 2)) * jnp.sqrt(jnp.sum(vg ** 2)))
    sd_g = jnp.std(g, ddof=1)
    sd_p = jnp.std(p, ddof=1)
    numerator = 2 * cor * sd_g * sd_p
    denominator = var_g + var_p + (mean_g - mean_p) ** 2
    return 1.0 - numerator / denominator


def ccc_loss(prediction, ground_truth, *,
             min_kernel_elems=_MIN_KERNEL_ELEMS,
             max_tile_rows=_DEFAULT_MAX_TILE_ROWS):
    """1 - CCC, exactly as ConcordanceCorCoeff.forward for 1-D inputs."""
    assert prediction.shape == ground_truth.shape
    assert prediction.ndim == 1
    n = prediction.shape[0]
    assert n >= 2, "unbiased var/std requires N >= 2"
    # Small batches: pallas_call launch + grid overhead dominates; XLA fuses this.
    if n < max(min_kernel_elems, 64 * _LANES):
        return _ccc_loss_ref(prediction, ground_truth)
    return _ccc_loss_pallas(prediction, ground_truth, max_tile_rows=max_tile_rows)


if __name__ == "__main__":
    key = jax.random.PRNGKey(0)
    k1, k2, k3, k4 = jax.random.split(key, 4)

    # 1) f32, n % 128 != 0: minimal 128-pad + in-kernel element masking.
    n1 = 50000
    p1 = jax.random.normal(k1, (n1,), jnp.float32)
    g1 = 0.8 * p1 + 0.3 * jax.random.normal(k2, (n1,), jnp.float32) + 0.1
    out1 = jax.block_until_ready(ccc_loss(p1, g1, min_kernel_elems=0))
    ref1 = _ccc_loss_ref(p1, g1)
    assert jnp.allclose(out1, ref1, rtol=1e-3, atol=1e-4), (out1, ref1)

    # 2) f32, n % 128 == 0 (copy-free fast path), small tiles -> multi-step per
    #    core with an odd block count (exercises index-map clamping + masking),
    #    nonzero means (exercises the pilot shift).
    n2 = 49920                                # 390 rows of 128
    p2 = jax.random.normal(k3, (n2,), jnp.float32) * 2.0 + 5.0
    g2 = 0.5 * p2 + jax.random.normal(k4, (n2,), jnp.float32) - 1.0
    out2 = jax.block_until_ready(ccc_loss(p2, g2, min_kernel_elems=0, max_tile_rows=64))
    ref2 = _ccc_loss_ref(p2, g2)
    assert jnp.allclose(out2, ref2, rtol=1e-3, atol=1e-4), (out2, ref2)

    # 3) bf16 inputs streamed natively, widened in-kernel (f32 accumulators).
    n3 = 40960                                # 320 rows of 128
    base = jax.random.normal(k1, (n3,), jnp.float32)
    p3 = base.astype(jnp.bfloat16)
    g3 = (0.5 * base + 0.5 * jax.random.normal(k2, (n3,), jnp.float32) + 0.2
          ).astype(jnp.bfloat16)
    out3 = jax.block_until_ready(ccc_loss(p3, g3, min_kernel_elems=0))
    ref3 = _ccc_loss_ref(p3, g3)
    assert jnp.allclose(out3, ref3, rtol=2e-3, atol=1e-3), (out3, ref3)

    # 4) default tiling (one big lane-dense block per core).
    n4 = 65536
    p4 = jax.random.normal(k2, (n4,), jnp.float32)
    g4 = 0.7 * p4 + 0.4 * jax.random.normal(k3, (n4,), jnp.float32) - 0.3
    out4 = jax.block_until_ready(ccc_loss(p4, g4, min_kernel_elems=0))
    ref4 = _ccc_loss_ref(p4, g4)
    assert jnp.allclose(out4, ref4, rtol=1e-3, atol=1e-4), (out4, ref4)

    # 5) tiny N -> pure-JAX fallback (same semantics).
    n5 = 8
    p5 = jax.random.normal(k3, (n5,), jnp.float32)
    g5 = jax.random.normal(k4, (n5,), jnp.float32) * 0.5 + 0.1
    out5 = jax.block_until_ready(ccc_loss(p5, g5))
    ref5 = _ccc_loss_ref(p5, g5)
    assert jnp.allclose(out5, ref5, rtol=1e-5, atol=1e-5), (out5, ref5)

    print("KERNEL_OK")
</pallas_src>

<mosaic_0001>
module attributes {stable_mosaic.version = 11 : i64} {
  func.func @_moments_kernel(%arg0: i32, %arg1: i32, %arg2: memref<2xf32, #tpu.memory_space<smem>>, %arg3: memref<200x128xf32, #tpu.memory_space<vmem>>, %arg4: memref<200x128xf32, #tpu.memory_space<vmem>>, %arg5: memref<1x40x128xf32, #tpu.memory_space<vmem>>) attributes {dimension_semantics = [#tpu.dimension_semantics<parallel>, #tpu.dimension_semantics<arbitrary>], iteration_bounds = array<i64: 2, 1>, scalar_prefetch = 0 : i64, scratch_operands = 0 : i64, tpu.core_type = #tpu.core_type<tc>, window_params = [{transform_indices = @transform_0, window_bounds = array<i64: 2>}, {transform_indices = @transform_1, window_bounds = array<i64: 200, 128>}, {transform_indices = @transform_2, window_bounds = array<i64: 200, 128>}, {transform_indices = @transform_3, window_bounds = array<i64: 1, 40, 128>}]} {
    %c0_i32 = arith.constant 0 : i32
    %0 = arith.cmpi eq, %arg1, %c0_i32 : i32
    %1 = arith.extui %0 : i1 to i32
    %c0_i32_0 = arith.constant 0 : i32
    %2 = arith.cmpi ne, %1, %c0_i32_0 : i32
    scf.if %2 {
      %cst_17 = arith.constant 0.000000e+00 : f32
      %44 = vector.broadcast %cst_17 : f32 to vector<40x128xf32>
      %c0_18 = arith.constant 0 : index
      %c0_19 = arith.constant 0 : index
      %c0_20 = arith.constant 0 : index
      %45 = vector.load %arg5[%c0_18, %c0_19, %c0_20] : memref<1x40x128xf32, #tpu.memory_space<vmem>>, vector<1x40x128xf32>
      %46 = vector.shape_cast %45 : vector<1x40x128xf32> to vector<40x128xf32>
      %47 = vector.shape_cast %44 : vector<40x128xf32> to vector<1x40x128xf32>
      tpu.vector_store %arg5[%c0_18, %c0_19, %c0_20], %47 {strides = array<i32>} : memref<1x40x128xf32, #tpu.memory_space<vmem>>, vector<1x40x128xf32>,
    } else {
    }
    %c1_i32 = arith.constant 1 : i32
    %3 = arith.muli %arg0, %c1_i32 : i32
    %4 = arith.addi %3, %arg1 : i32
    %c0 = arith.constant 0 : index
    %c0_1 = arith.constant 0 : index
    %5 = vector.load %arg3[%c0, %c0_1] : memref<200x128xf32, #tpu.memory_space<vmem>>, vector<200x128xf32>
    %c0_2 = arith.constant 0 : index
    %6 = memref.load %arg2[%c0_2] : memref<2xf32, #tpu.memory_space<smem>>
    %7 = vector.broadcast %6 : f32 to vector<200x128xf32>
    %8 = arith.subf %5, %7 : vector<200x128xf32>
    %c0_3 = arith.constant 0 : index
    %c0_4 = arith.constant 0 : index
    %9 = vector.load %arg4[%c0_3, %c0_4] : memref<200x128xf32, #tpu.memory_space<vmem>>, vector<200x128xf32>
    %c1 = arith.constant 1 : index
    %10 = memref.load %arg2[%c1] : memref<2xf32, #tpu.memory_space<smem>>
    %11 = vector.broadcast %10 : f32 to vector<200x128xf32>
    %12 = arith.subf %9, %11 : vector<200x128xf32>
    %13 = tpu.iota {dimensions = array<i32: 0>} : vector<200x128xi32>
    %14 = tpu.iota {dimensions = array<i32: 1>} : vector<200x128xi32>
    %c200_i32 = arith.constant 200 : i32
    %15 = arith.muli %4, %c200_i32 : i32
    %16 = vector.broadcast %15 : i32 to vector<200x128xi32>
    %17 = arith.addi %16, %13 : vector<200x128xi32>
    %c128_i32 = arith.constant 128 : i32
    %18 = vector.broadcast %c128_i32 : i32 to vector<200x128xi32>
    %19 = arith.muli %17, %18 : vector<200x128xi32>
    %20 = arith.addi %19, %14 : vector<200x128xi32>
    %c50000_i32 = arith.constant 50000 : i32
    %21 = vector.broadcast %c50000_i32 : i32 to vector<200x128xi32>
    %22 = arith.cmpi slt, %20, %21 : vector<200x128xi32>
    %cst = arith.constant 0.000000e+00 : f32
    %23 = vector.broadcast %cst : f32 to vector<200x128xf32>
    %24 = arith.select %22, %8, %23 : vector<200x128xi1>, vector<200x128xf32>
    %cst_5 = arith.constant 0.000000e+00 : f32
    %25 = vector.broadcast %cst_5 : f32 to vector<200x128xf32>
    %26 = arith.select %22, %12, %25 : vector<200x128xi1>, vector<200x128xf32>
    %27 = vector.shape_cast %24 : vector<200x128xf32> to vector<25x8x128xf32>
    %28 = vector.shape_cast %26 : vector<200x128xf32> to vector<25x8x128xf32>
    %cst_6 = arith.constant dense<0.000000e+00> : vector<8x128xf32>
    %29 = vector.multi_reduction <add>, %27, %cst_6 [0] : vector<25x8x128xf32> to vector<8x128xf32>
    %cst_7 = arith.constant dense<0.000000e+00> : vector<8x128xf32>
    %30 = vector.multi_reduction <add>, %28, %cst_7 [0] : vector<25x8x128xf32> to vector<8x128xf32>
    %31 = arith.mulf %27, %27 : vector<25x8x128xf32>
    %cst_8 = arith.constant dense<0.000000e+00> : vector<8x128xf32>
    %32 = vector.multi_reduction <add>, %31, %cst_8 [0] : vector<25x8x128xf32> to vector<8x128xf32>
    %33 = arith.mulf %28, %28 : vector<25x8x128xf32>
    %cst_9 = arith.constant dense<0.000000e+00> : vector<8x128xf32>
    %34 = vector.multi_reduction <add>, %33, %cst_9 [0] : vector<25x8x128xf32> to vector<8x128xf32>
    %35 = arith.mulf %27, %28 : vector<25x8x128xf32>
    %cst_10 = arith.constant dense<0.000000e+00> : vector<8x128xf32>
    %36 = vector.multi_reduction <add>, %35, %cst_10 [0] : vector<25x8x128xf32> to vector<8x128xf32>
    %37 = tpu.concatenate %29, %30, %32, %34, %36 in 0 : vector<8x128xf32>, vector<8x128xf32>, vector<8x128xf32>, vector<8x128xf32>, vector<8x128xf32> -> vector<40x128xf32>
    %c0_11 = arith.constant 0 : index
    %c0_12 = arith.constant 0 : index
    %c0_13 = arith.constant 0 : index
    %38 = vector.load %arg5[%c0_11, %c0_12, %c0_13] : memref<1x40x128xf32, #tpu.memory_space<vmem>>, vector<1x40x128xf32>
    %39 = vector.shape_cast %38 : vector<1x40x128xf32> to vector<40x128xf32>
    %40 = arith.addf %39, %37 : vector<40x128xf32>
    %c0_14 = arith.constant 0 : index
    %c0_15 = arith.constant 0 : index
    %c0_16 = arith.constant 0 : index
    %41 = vector.load %arg5[%c0_14, %c0_15, %c0_16] : memref<1x40x128xf32, #tpu.memory_space<vmem>>, vector<1x40x128xf32>
    %42 = vector.shape_cast %41 : vector<1x40x128xf32> to vector<40x128xf32>
    %43 = vector.shape_cast %40 : vector<40x128xf32> to vector<1x40x128xf32>
    tpu.vector_store %arg5[%c0_14, %c0_15, %c0_16], %43 {strides = array<i32>} : memref<1x40x128xf32, #tpu.memory_space<vmem>>, vector<1x40x128xf32>,
    return
  }
  func.func @transform_0(%arg0: i32, %arg1: i32) -> i32 {
    %c0_i32 = arith.constant 0 : i32
    %c0_i32_0 = arith.constant 0 : i32
    return %c0_i32 : i32
  }
  func.func @transform_1(%arg0: i32, %arg1: i32) -> (i32, i32) {
    %c1_i32 = arith.constant 1 : i32
    %0 = arith.muli %arg0, %c1_i32 : i32
    %1 = arith.addi %0, %arg1 : i32
    %c1_i32_0 = arith.constant 1 : i32
    %2 = arith.minsi %1, %c1_i32_0 : i32
    %c0_i32 = arith.constant 0 : i32
    %c0_i32_1 = arith.constant 0 : i32
    return %2, %c0_i32 : i32, i32
  }
  func.func @transform_2(%arg0: i32, %arg1: i32) -> (i32, i32) {
    %c1_i32 = arith.constant 1 : i32
    %0 = arith.muli %arg0, %c1_i32 : i32
    %1 = arith.addi %0, %arg1 : i32
    %c1_i32_0 = arith.constant 1 : i32
    %2 = arith.minsi %1, %c1_i32_0 : i32
    %c0_i32 = arith.constant 0 : i32
    %c0_i32_1 = arith.constant 0 : i32
    return %2, %c0_i32 : i32, i32
  }
  func.func @transform_3(%arg0: i32, %arg1: i32) -> (i32, i32, i32) {
    %c0_i32 = arith.constant 0 : i32
    %c0_i32_0 = arith.constant 0 : i32
    %c0_i32_1 = arith.constant 0 : i32
    return %arg0, %c0_i32, %c0_i32_0 : i32, i32, i32
  }
}

</mosaic_0001>

<llo_original>
// kernel: tpu_custom_call.1
$region0: #{tpu_custom_call.1}
  #allocation0 [shape = 'u32[]', space=smem, size = 0x4, offset = 0x4, fixed_abs, tag = 'smem constant byte address 0x4 - core index']
  #allocation1 [shape = 'u32[144,128]{1,0:T(1,128)}', space=vmem, size = 0x12000, scoped, tag = 'internal scratch']
  %s0 = inlined_call_operand.hbm [shape: f32[2], index: 0, kind: input, shape index: {}]
  %s1 = inlined_call_operand.hbm [shape: f32[391,128], index: 1, kind: input, shape index: {}]
  %s2 = inlined_call_operand.hbm [shape: f32[391,128], index: 2, kind: input, shape index: {}]
  %s3 = inlined_call_operand.hbm [shape: f32[2,40,128], index: 3, kind: output, shape index: {}]
  %s4 = sld [smem:[#allocation0]]
  $region61: #{tpu_custom_call.1} parent=0
    _
  %s6 = ssub.s32 1, %s4
  %s7 = scalar_select 0, %s6, %s4
  $region1: #{tpu_custom_call.1} parent=0
    #allocation2 [shape = 'u8[512]{0}', space=smem, size = 0x200, scoped, tag = 'input window, operand 0, single buffered']
    #allocation3 [shape = 's32[2]{0}', space=sflag, size = 0x8, scoped, tag = 'scoped memory for tpu_custom_call.1']
    #allocation4 [shape = 's32[2]{0}', space=sflag, size = 0x8, scoped, tag = 'scoped memory for tpu_custom_call.1']
    #allocation5 [shape = 's32[2]{0}', space=sflag, size = 0x8, scoped, tag = 'scoped memory for tpu_custom_call.1']
    #allocation6 [shape = 'u8[204800]{0}', space=vmem, size = 0x32000, scoped, tag = 'input window, operand 1']
    #allocation7 [shape = 'u8[204800]{0}', space=vmem, size = 0x32000, scoped, tag = 'input window, operand 2']
    #allocation8 [shape = 's32[2]{0}', space=sflag, size = 0x8, scoped, tag = 'scoped memory for tpu_custom_call.1']
    #allocation9 [shape = 'u8[40960]{0}', space=vmem, size = 0xa000, scoped, tag = 'output window, operand 0']
    %8 = vsyncpa [#allocation5], 0
    %9 = vsyncpa [#allocation3], 0
    %s10 = scalar_lea.sflag [#allocation3], 1
    %11 = vsyncpa %s10, 0
    %12 = vsyncpa [#allocation8], 0
    %s13 = scalar_lea.sflag [#allocation8], 1
    %14 = vsyncpa %s13, 0
    %15 = vsyncpa [#allocation4], 0
    %s16 = scalar_lea.sflag [#allocation4], 1
    %17 = vsyncpa %s16, 0
    loop: start=0, step=1, limit=4
    $region2: #{tpu_custom_call.1} parent=1 // loop_pre_header
      _
    $region3: #{tpu_custom_call.1} parent=1 // loop_header
      %s19 = sphi 0, %s23
      %p20 = scmp.ge.s32.totalorder %s19, 4
      %s26 = sphi 0, %s38
      %s27 = sphi 0, %s34
      %s28 = sphi 0, %s26
      %s29 = sphi 0, %s27
      %s30 = sphi 0, %s28
      %s31 = sphi 0, %s29
      %s39 = sphi 0, %s39
      %s41 = sphi 0, %s39
      %s42 = sphi 0, %s41
      %s56 = sphi 0, %s42
      %s68 = sphi 0, %s70
      %s71 = sphi 0, %s68
      %s72 = sphi 0, %s71
      %s88 = sphi 0, %s72
      %s100 = sphi 0, %s102
      %s103 = sphi 0, %s100
      %s104 = sphi 0, %s103
      %s120 = sphi 0, %s104
      %s126 = sphi 0, %s128
      %s129 = sphi 0, %s126
      %s130 = sphi 0, %s129
      %s146 = sphi 0, %s130
    $region4: #{tpu_custom_call.1} parent=1 // loop_header_branch
      %22 = sbr.rel (%p20) target = $region8
    $region5: #{tpu_custom_call.1} parent=1 // loop_body
      %s24 = ssub.s32 %s19, 1
      %s25 = ssub.s32 %s19, 2
      %s32 = sadd.s32 1, %s27
      %p33 = scmp.ge.s32.totalorder %s32, 1
      %s34 = scalar_select %p33, 0, %s32
      %s35 = sadd.s32 1, %s26
      %s36 = scalar_select %p33, %s35, %s26
      %p37 = scmp.ge.s32.totalorder %s36, 2
      %s38 = scalar_select %p37, 0, %s36
      %s40 = sadd.s32 %s39, 1
      %p43 = scmp.eq.s32.totalorder %s19, 1
      %p44 = scmp.ne.s32.totalorder %s39, %s41
      %p45 = scmp.eq.s32.totalorder %s19, 0
      %p46 = por %p44, %p45
      %p47 = scmp.ne.s32.totalorder %s39, %s41
      %p48 = scmp.eq.s32.totalorder %s24, 1
      %p49 = por %p47, %p48
      %p50 = scmp.ne.s32.totalorder %s41, %s42
      %p51 = scmp.eq.s32.totalorder %s24, 0
      %p52 = por %p50, %p51
      %p53 = scmp.ne.s32.totalorder %s41, %s42
      %p54 = scmp.eq.s32.totalorder %s25, 1
      %p55 = por %p53, %p54
      %p57 = scmp.ne.s32.totalorder %s42, %s56
      %p58 = scmp.eq.s32.totalorder %s25, 0
      %p59 = por %p57, %p58
      %s60 = sadd.s32 %s26, %s27
      %p61 = scmp.lt.s32.totalorder %s60, 1
      %s62 = scalar_select %p61, %s60, 1
      %s63 = sadd.s32 %s38, %s34
      %p64 = scmp.lt.s32.totalorder %s63, 1
      %s65 = scalar_select %p64, %s63, 1
      %s66 = ssub.s32 %s62, %s65
      %p67 = scmp.eq.s32.totalorder %s66, 0
      %s69 = sadd.s32 %s68, 1
      %s70 = scalar_select %p67, %s68, %s69
      %p73 = pneg %p67
      %p74 = scmp.eq.s32.totalorder %s19, 1
      %p75 = por %p73, %p74
      %p76 = scmp.ne.s32.totalorder %s68, %s71
      %p77 = scmp.eq.s32.totalorder %s19, 0
      %p78 = por %p76, %p77
      %p79 = scmp.ne.s32.totalorder %s68, %s71
      %p80 = scmp.eq.s32.totalorder %s24, 1
      %p81 = por %p79, %p80
      %p82 = scmp.ne.s32.totalorder %s71, %s72
      %p83 = scmp.eq.s32.totalorder %s24, 0
      %p84 = por %p82, %p83
      %p85 = scmp.ne.s32.totalorder %s71, %s72
      %p86 = scmp.eq.s32.totalorder %s25, 1
      %p87 = por %p85, %p86
      %p89 = scmp.ne.s32.totalorder %s72, %s88
      %p90 = scmp.eq.s32.totalorder %s25, 0
      %p91 = por %p89, %p90
      %s92 = sadd.s32 %s26, %s27
      %p93 = scmp.lt.s32.totalorder %s92, 1
      %s94 = scalar_select %p93, %s92, 1
      %s95 = sadd.s32 %s38, %s34
      %p96 = scmp.lt.s32.totalorder %s95, 1
      %s97 = scalar_select %p96, %s95, 1
      %s98 = ssub.s32 %s94, %s97
      %p99 = scmp.eq.s32.totalorder %s98, 0
      %s101 = sadd.s32 %s100, 1
      %s102 = scalar_select %p99, %s100, %s101
      %p105 = pneg %p99
      %p106 = scmp.eq.s32.totalorder %s19, 1
      %p107 = por %p105, %p106
      %p108 = scmp.ne.s32.totalorder %s100, %s103
      %p109 = scmp.eq.s32.totalorder %s19, 0
      %p110 = por %p108, %p109
      %p111 = scmp.ne.s32.totalorder %s100, %s103
      %p112 = scmp.eq.s32.totalorder %s24, 1
      %p113 = por %p111, %p112
      %p114 = scmp.ne.s32.totalorder %s103, %s104
      %p115 = scmp.eq.s32.totalorder %s24, 0
      %p116 = por %p114, %p115
      %p117 = scmp.ne.s32.totalorder %s103, %s104
      %p118 = scmp.eq.s32.totalorder %s25, 1
      %p119 = por %p117, %p118
      %p121 = scmp.ne.s32.totalorder %s104, %s120
      %p122 = scmp.eq.s32.totalorder %s25, 0
      %p123 = por %p121, %p122
      %s124 = ssub.s32 %s26, %s38
      %p125 = scmp.eq.s32.totalorder %s124, 0
      %s127 = sadd.s32 %s126, 1
      %s128 = scalar_select %p125, %s126, %s127
      %p131 = pneg %p125
      %p132 = scmp.eq.s32.totalorder %s19, 1
      %p133 = por %p131, %p132
      %p134 = scmp.ne.s32.totalorder %s126, %s129
      %p135 = scmp.eq.s32.totalorder %s19, 0
      %p136 = por %p134, %p135
      %p137 = scmp.ne.s32.totalorder %s126, %s129
      %p138 = scmp.eq.s32.totalorder %s24, 1
      %p139 = por %p137, %p138
      %p140 = scmp.ne.s32.totalorder %s129, %s130
      %p141 = scmp.eq.s32.totalorder %s24, 0
      %p142 = por %p140, %p141
      %p143 = scmp.ne.s32.totalorder %s129, %s130
      %p144 = scmp.eq.s32.totalorder %s25, 1
      %p145 = por %p143, %p144
      %p147 = scmp.ne.s32.totalorder %s130, %s146
      %p148 = scmp.eq.s32.totalorder %s25, 0
      %p149 = por %p147, %p148
      %p150 = scmp.le.s32.totalorder 1, %s19
      %p151 = scmp.lt.s32.totalorder %s19, 3
      %p152 = pnand %p150, %p151
      %p153 = pneg %p152
      // Predicated region
      $region9: #{tpu_custom_call.1} parent=5 // pred_check
        _
      $region10: #{tpu_custom_call.1} parent=5 // pred_check_branch
        %155 = sbr.rel (%p152) target = $region12
      $region11: #{tpu_custom_call.1} parent=5 // pred_region
        %s156 = ssub.s32 %s19, 1
        // Predicated region
        $region13: #{tpu_custom_call.1} parent=11 // pred_check
          %p157 = pneg %p52
        $region14: #{tpu_custom_call.1} parent=11 // pred_check_branch
          %159 = sbr.rel (%p157) target = $region16
        $region15: #{tpu_custom_call.1} parent=11 // pred_region
          %s161 = ssub.s32 16, 16
          %162 = vsyncadd [#allocation5], %s161
          %165 = dma.hbm_to_smem %s0, 16, [#allocation2], [#allocation5]
        $region16: #{tpu_custom_call.1} parent=11 // pred_fallthru
          _
      $region12: #{tpu_custom_call.1} parent=5 // pred_fallthru
        _
      %p166 = scmp.lt.s32.totalorder %s19, 2
      // Predicated region
      $region17: #{tpu_custom_call.1} parent=5 // pred_check
        %p167 = pneg %p166
      $region18: #{tpu_custom_call.1} parent=5 // pred_check_branch
        %169 = sbr.rel (%p167) target = $region20
      $region19: #{tpu_custom_call.1} parent=5 // pred_region
        // Predicated region
        $region21: #{tpu_custom_call.1} parent=19 // pred_check
          %p170 = pneg %p78
        $region22: #{tpu_custom_call.1} parent=19 // pred_check_branch
          %172 = sbr.rel (%p170) target = $region24
        $region23: #{tpu_custom_call.1} parent=19 // pred_region
          %s173 = sand.u32 %s68, 1
          %s174 = scalar_lea.sflag [#allocation3], %s173
          %s175 = sand.u32 %s68, 1
          %s176 = smul.addr %s175, 200
          %s177 = scalar_lea.vmem [#allocation6], %s176
          %s178 = sadd.s32 %s26, %s27
          %p179 = scmp.lt.s32.totalorder %s178, 1
          %s180 = scalar_select %p179, %s178, 1
          %s181 = smul.u32 25, %s180
          %s182 = ssub.s32 49, %s181
          %p183 = scmp.lt.s32.totalorder %s182, 25
          %s184 = scalar_select %p183, %s182, 25
          %s185 = smul.u32 128, %s184
          %s187 = ssub.s32 3200, %s185
          %188 = vsyncadd %s174, %s187
          %p189 = scmp.ne.s32.totalorder 0, %s185
          %s190 = smul.addr %s181, 128
          %s191 = scalar_lea.hbm %s1, %s190
          %s192 = smul.u32 8, %s184
          %s193 = sshll.u32 %s177, 4
          %s194 = int_to_ptr.vmem [resolvable:$true] %s193
          %s195 = sshll.u32 %s192, 4
          %199 = dma.hbm_to_vmem [thread:$0]  (%p189), %s191, %s195, %s194, %s174, 128, 128, 8
        $region24: #{tpu_custom_call.1} parent=19 // pred_fallthru
          _
        // Predicated region
        $region25: #{tpu_custom_call.1} parent=19 // pred_check
          %p200 = pneg %p110
        $region26: #{tpu_custom_call.1} parent=19 // pred_check_branch
          %202 = sbr.rel (%p200) target = $region28
        $region27: #{tpu_custom_call.1} parent=19 // pred_region
          %s203 = sand.u32 %s100, 1
          %s204 = scalar_lea.sflag [#allocation8], %s203
          %s205 = sand.u32 %s100, 1
          %s206 = smul.addr %s205, 200
          %s207 = scalar_lea.vmem [#allocation7], %s206
          %s208 = sadd.s32 %s26, %s27
          %p209 = scmp.lt.s32.totalorder %s208, 1
          %s210 = scalar_select %p209, %s208, 1
          %s211 = smul.u32 25, %s210
          %s212 = ssub.s32 49, %s211
          %p213 = scmp.lt.s32.totalorder %s212, 25
          %s214 = scalar_select %p213, %s212, 25
          %s215 = smul.u32 128, %s214
          %s217 = ssub.s32 3200, %s215
          %218 = vsyncadd %s204, %s217
          %p219 = scmp.ne.s32.totalorder 0, %s215
          %s220 = smul.addr %s211, 128
          %s221 = scalar_lea.hbm %s2, %s220
          %s222 = smul.u32 8, %s214
          %s223 = sshll.u32 %s207, 4
          %s224 = int_to_ptr.vmem [resolvable:$true] %s223
          %s225 = sshll.u32 %s222, 4
          %229 = dma.hbm_to_vmem [thread:$0]  (%p219), %s221, %s225, %s224, %s204, 128, 128, 8
        $region28: #{tpu_custom_call.1} parent=19 // pred_fallthru
          _
      $region20: #{tpu_custom_call.1} parent=5 // pred_fallthru
        _
      %p230 = scmp.le.s32.totalorder 1, %s19
      %p231 = scmp.lt.s32.totalorder %s19, 3
      %p232 = pnand %p230, %p231
      %p233 = pneg %p232
      // Predicated region
      $region29: #{tpu_custom_call.1} parent=5 // pred_check
        _
      $region30: #{tpu_custom_call.1} parent=5 // pred_check_branch
        %235 = sbr.rel (%p232) target = $region32
      $region31: #{tpu_custom_call.1} parent=5 // pred_region
        %s236 = ssub.s32 %s19, 1
        // Predicated region
        $region33: #{tpu_custom_call.1} parent=31 // pred_check
          %p237 = pneg %p52
        $region34: #{tpu_custom_call.1} parent=31 // pred_check_branch
          %239 = sbr.rel (%p237) target = $region36
        $region35: #{tpu_custom_call.1} parent=31 // pred_region
          %240 = dma.done [#allocation5], 16
        $region36: #{tpu_custom_call.1} parent=31 // pred_fallthru
          _
        %s241 = sand.u32 %s71, 1
        %s242 = scalar_lea.sflag [#allocation3], %s241
        %s243 = sand.u32 %s71, 1
        %s244 = smul.addr %s243, 200
        %s245 = scalar_lea.vmem [#allocation6], %s244
        // Predicated region
        $region37: #{tpu_custom_call.1} parent=31 // pred_check
          %p246 = pneg %p84
        $region38: #{tpu_custom_call.1} parent=31 // pred_check_branch
          %248 = sbr.rel (%p246) target = $region40
        $region39: #{tpu_custom_call.1} parent=31 // pred_region
          %249 = dma.done %s242, 3200
        $region40: #{tpu_custom_call.1} parent=31 // pred_fallthru
          _
        %s250 = sand.u32 %s103, 1
        %s251 = scalar_lea.sflag [#allocation8], %s250
        %s252 = sand.u32 %s103, 1
        %s253 = smul.addr %s252, 200
        %s254 = scalar_lea.vmem [#allocation7], %s253
        // Predicated region
        $region41: #{tpu_custom_call.1} parent=31 // pred_check
          %p255 = pneg %p116
        $region42: #{tpu_custom_call.1} parent=31 // pred_check_branch
          %257 = sbr.rel (%p255) target = $region44
        $region43: #{tpu_custom_call.1} parent=31 // pred_region
          %258 = dma.done %s251, 3200
        $region44: #{tpu_custom_call.1} parent=31 // pred_fallthru
          _
        %259 = sfence
        %p260 = pneg %p52
        %p261 = pneg %p49
        %s262 = sand.u32 %s71, 1
        %s263 = scalar_lea.sflag [#allocation3], %s262
        %s264 = sand.u32 %s71, 1
        %s265 = smul.addr %s264, 200
        %s266 = scalar_lea.vmem [#allocation6], %s265
        %p267 = pneg %p84
        %p268 = pneg %p81
        %s269 = sand.u32 %s103, 1
        %s270 = scalar_lea.sflag [#allocation8], %s269
        %s271 = sand.u32 %s103, 1
        %s272 = smul.addr %s271, 200
        %s273 = scalar_lea.vmem [#allocation7], %s272
        %p274 = pneg %p116
        %p275 = pneg %p113
        %p276 = pneg %p142
        %p277 = pneg %p139
        %s278 = sand.u32 %s129, 1
        %s279 = scalar_lea.sflag [#allocation4], %s278
        %s280 = sand.u32 %s129, 1
        %s281 = smul.addr %s280, 40
        %s282 = scalar_lea.vmem [#allocation9], %s281
        %s283 = sadd.s32 %s28, %s29
        %p284 = scmp.lt.s32.totalorder %s283, 1
        %s285 = scalar_select %p284, %s283, 1
        %s286 = smul.u32 25, %s285
        %s287 = ssub.s32 49, %s286
        %p288 = scmp.lt.s32.totalorder %s287, 25
        %s289 = scalar_select %p288, %s287, 25
        %s290 = smul.u32 128, %s289
        %s291 = sadd.s32 %s28, %s29
        %p292 = scmp.lt.s32.totalorder %s291, 1
        %s293 = scalar_select %p292, %s291, 1
        %s294 = smul.u32 25, %s293
        %s295 = ssub.s32 49, %s294
        %p296 = scmp.lt.s32.totalorder %s295, 25
        %s297 = scalar_select %p296, %s295, 25
        %s298 = smul.u32 128, %s297
        %p299 = scmp.eq.s32.totalorder %s29, 0
        // Predicated region
        $region45: #{tpu_custom_call.1} parent=31 // pred_check
          %p300 = pneg %p299
        $region46: #{tpu_custom_call.1} parent=31 // pred_check_branch
          %302 = sbr.rel (%p300) target = $region48
        $region47: #{tpu_custom_call.1} parent=31 // pred_region
          %303 = vst [vmem:[%s282] sm:$0xff] 0.0
          %304 = vst [vmem:[%s282 + $0x8] sm:$0xff] 0.0
          %305 = vst [vmem:[%s282 + $0x10] sm:$0xff] 0.0
          %306 = vst [vmem:[%s282 + $0x18] sm:$0xff] 0.0
          %307 = vst [vmem:[%s282 + $0x20] sm:$0xff] 0.0
        $region48: #{tpu_custom_call.1} parent=31 // pred_fallthru
          _
        %s308 = sadd.s32 %s28, %s29
        %v309 = vld [vmem:[%s245] sm:$0xff]
        %v310 = vld [vmem:[%s245 + $0x8] sm:$0xff]
        %v311 = vld [vmem:[%s245 + $0x10] sm:$0xff]
        %v312 = vld [vmem:[%s245 + $0x18] sm:$0xff]
        %v313 = vld [vmem:[%s245 + $0x20] sm:$0xff]
        %v314 = vld [vmem:[%s245 + $0x28] sm:$0xff]
        %v315 = vld [vmem:[%s245 + $0x30] sm:$0xff]
        %v316 = vld [vmem:[%s245 + $0x38] sm:$0xff]
        %v317 = vld [vmem:[%s245 + $0x40] sm:$0xff]
        %v318 = vld [vmem:[%s245 + $0x48] sm:$0xff]
        %v319 = vld [vmem:[%s245 + $0x50] sm:$0xff]
        %v320 = vld [vmem:[%s245 + $0x58] sm:$0xff]
        %v321 = vld [vmem:[%s245 + $0x60] sm:$0xff]
        %v322 = vld [vmem:[%s245 + $0x68] sm:$0xff]
        %v323 = vld [vmem:[%s245 + $0x70] sm:$0xff]
        %v324 = vld [vmem:[%s245 + $0x78] sm:$0xff]
        %v325 = vld [vmem:[%s245 + $0x80] sm:$0xff]
        %v326 = vld [vmem:[%s245 + $0x88] sm:$0xff]
        %v327 = vld [vmem:[%s245 + $0x90] sm:$0xff]
        %v328 = vld [vmem:[%s245 + $0x98] sm:$0xff]
        %v329 = vld [vmem:[%s245 + $0xa0] sm:$0xff]
        %v330 = vld [vmem:[%s245 + $0xa8] sm:$0xff]
        %v331 = vld [vmem:[%s245 + $0xb0] sm:$0xff]
        %v332 = vld [vmem:[%s245 + $0xb8] sm:$0xff]
        %v333 = vld [vmem:[%s245 + $0xc0] sm:$0xff]
        %s334 = sld [smem:[#allocation2]]
        %v335 = vstv %s334
        %v336 = vsub.f32 %v309, %v335
        %v337 = vsub.f32 %v310, %v335
        %v338 = vsub.f32 %v311, %v335
        %v339 = vsub.f32 %v312, %v335
        %v340 = vsub.f32 %v313, %v335
        %v341 = vsub.f32 %v314, %v335
        %v342 = vsub.f32 %v315, %v335
        %v343 = vsub.f32 %v316, %v335
        %v344 = vsub.f32 %v317, %v335
        %v345 = vsub.f32 %v318, %v335
        %v346 = vsub.f32 %v319, %v335
        %v347 = vsub.f32 %v320, %v335
        %v348 = vsub.f32 %v321, %v335
        %v349 = vsub.f32 %v322, %v335
        %v350 = vsub.f32 %v323, %v335
        %v351 = vsub.f32 %v324, %v335
        %v352 = vsub.f32 %v325, %v335
        %v353 = vsub.f32 %v326, %v335
        %v354 = vsub.f32 %v327, %v335
        %v355 = vsub.f32 %v328, %v335
        %v356 = vsub.f32 %v329, %v335
        %v357 = vsub.f32 %v330, %v335
        %v358 = vsub.f32 %v331, %v335
        %v359 = vsub.f32 %v332, %v335
        %v360 = vsub.f32 %v333, %v335
        %v361 = vld [vmem:[%s254] sm:$0xff]
        %v362 = vld [vmem:[%s254 + $0x8] sm:$0xff]
        %v363 = vld [vmem:[%s254 + $0x10] sm:$0xff]
        %v364 = vld [vmem:[%s254 + $0x18] sm:$0xff]
        %v365 = vld [vmem:[%s254 + $0x20] sm:$0xff]
        %v366 = vld [vmem:[%s254 + $0x28] sm:$0xff]
        %v367 = vld [vmem:[%s254 + $0x30] sm:$0xff]
        %v368 = vld [vmem:[%s254 + $0x38] sm:$0xff]
        %v369 = vld [vmem:[%s254 + $0x40] sm:$0xff]
        %v370 = vld [vmem:[%s254 + $0x48] sm:$0xff]
        %v371 = vld [vmem:[%s254 + $0x50] sm:$0xff]
        %v372 = vld [vmem:[%s254 + $0x58] sm:$0xff]
        %v373 = vld [vmem:[%s254 + $0x60] sm:$0xff]
        %v374 = vld [vmem:[%s254 + $0x68] sm:$0xff]
        %v375 = vld [vmem:[%s254 + $0x70] sm:$0xff]
        %v376 = vld [vmem:[%s254 + $0x78] sm:$0xff]
        %v377 = vld [vmem:[%s254 + $0x80] sm:$0xff]
        %v378 = vld [vmem:[%s254 + $0x88] sm:$0xff]
        %v379 = vld [vmem:[%s254 + $0x90] sm:$0xff]
        %v380 = vld [vmem:[%s254 + $0x98] sm:$0xff]
        %v381 = vld [vmem:[%s254 + $0xa0] sm:$0xff]
        %v382 = vld [vmem:[%s254 + $0xa8] sm:$0xff]
        %v383 = vld [vmem:[%s254 + $0xb0] sm:$0xff]
        %v384 = vld [vmem:[%s254 + $0xb8] sm:$0xff]
        %v385 = vld [vmem:[%s254 + $0xc0] sm:$0xff]
        %s386 = sld [smem:[#allocation2 + $0x1]]
        %v387 = vstv %s386
        %v388 = vsub.f32 %v361, %v387
        %v389 = vsub.f32 %v362, %v387
        %v390 = vsub.f32 %v363, %v387
        %v391 = vsub.f32 %v364, %v387
        %v392 = vsub.f32 %v365, %v387
        %v393 = vsub.f32 %v366, %v387
        %v394 = vsub.f32 %v367, %v387
        %v395 = vsub.f32 %v368, %v387
        %v396 = vsub.f32 %v369, %v387
        %v397 = vsub.f32 %v370, %v387
        %v398 = vsub.f32 %v371, %v387
        %v399 = vsub.f32 %v372, %v387
        %v400 = vsub.f32 %v373, %v387
        %v401 = vsub.f32 %v374, %v387
        %v402 = vsub.f32 %v375, %v387
        %v403 = vsub.f32 %v376, %v387
        %v404 = vsub.f32 %v377, %v387
        %v405 = vsub.f32 %v378, %v387
        %v406 = vsub.f32 %v379, %v387
        %v407 = vsub.f32 %v380, %v387
        %v408 = vsub.f32 %v381, %v387
        %v409 = vsub.f32 %v382, %v387
        %v410 = vsub.f32 %v383, %v387
        %v411 = vsub.f32 %v384, %v387
        %v412 = vsub.f32 %v385, %v387
        %v413 = vlaneseq
        %v414 = vshrl.u32 %v413, 7
        %v415 = vadd.s32 %v414, 8
        %v416 = vadd.s32 %v414, 16
        %v417 = vadd.s32 %v414, 24
        %v418 = vadd.s32 %v414, 32
        %v419 = vadd.s32 %v414, 40
        %v420 = vadd.s32 %v414, 48
        %v421 = vadd.s32 %v414, 56
        %v422 = vadd.s32 %v414, 64
        %v423 = vadd.s32 %v414, 72
        %v424 = vadd.s32 %v414, 80
        %v425 = vadd.s32 %v414, 88
        %v426 = vadd.s32 %v414, 96
        %v427 = vadd.s32 %v414, 104
        %v428 = vadd.s32 %v414, 112
        %v429 = vadd.s32 %v414, 120
        %v430 = vadd.s32 %v414, 128
        %v431 = vadd.s32 %v414, 136
        %v432 = vadd.s32 %v414, 144
        %v433 = vadd.s32 %v414, 152
        %v434 = vadd.s32 %v414, 160
        %v435 = vadd.s32 %v414, 168
        %v436 = vadd.s32 %v414, 176
        %v437 = vadd.s32 %v414, 184
        %v438 = vadd.s32 %v414, 192
        %v439 = vlaneseq
        %v440 = vand.u32 %v439, 127
        %s441 = smul.u32 %s308, 200
        %v442 = vstv %s441
        %v443 = vadd.s32 %v442, %v414
        %v444 = vadd.s32 %v442, %v415
        %v445 = vadd.s32 %v442, %v416
        %v446 = vadd.s32 %v442, %v417
        %v447 = vadd.s32 %v442, %v418
        %v448 = vadd.s32 %v442, %v419
        %v449 = vadd.s32 %v442, %v420
        %v450 = vadd.s32 %v442, %v421
        %v451 = vadd.s32 %v442, %v422
        %v452 = vadd.s32 %v442, %v423
        %v453 = vadd.s32 %v442, %v424
        %v454 = vadd.s32 %v442, %v425
        %v455 = vadd.s32 %v442, %v426
        %v456 = vadd.s32 %v442, %v427
        %v457 = vadd.s32 %v442, %v428
        %v458 = vadd.s32 %v442, %v429
        %v459 = vadd.s32 %v442, %v430
        %v460 = vadd.s32 %v442, %v431
        %v461 = vadd.s32 %v442, %v432
        %v462 = vadd.s32 %v442, %v433
        %v463 = vadd.s32 %v442, %v434
        %v464 = vadd.s32 %v442, %v435
        %v465 = vadd.s32 %v442, %v436
        %v466 = vadd.s32 %v442, %v437
        %v467 = vadd.s32 %v442, %v438
        %v468 = vmul.u32 %v443, 128
        %v469 = vmul.u32 %v444, 128
        %v470 = vmul.u32 %v445, 128
        %v471 = vmul.u32 %v446, 128
        %v472 = vmul.u32 %v447, 128
        %v473 = vmul.u32 %v448, 128
        %v474 = vmul.u32 %v449, 128
        %v475 = vmul.u32 %v450, 128
        %v476 = vmul.u32 %v451, 128
        %v477 = vmul.u32 %v452, 128
        %v478 = vmul.u32 %v453, 128
        %v479 = vmul.u32 %v454, 128
        %v480 = vmul.u32 %v455, 128
        %v481 = vmul.u32 %v456, 128
        %v482 = vmul.u32 %v457, 128
        %v483 = vmul.u32 %v458, 128
        %v484 = vmul.u32 %v459, 128
        %v485 = vmul.u32 %v460, 128
        %v486 = vmul.u32 %v461, 128
        %v487 = vmul.u32 %v462, 128
        %v488 = vmul.u32 %v463, 128
        %v489 = vmul.u32 %v464, 128
        %v490 = vmul.u32 %v465, 128
        %v491 = vmul.u32 %v466, 128
        %v492 = vmul.u32 %v467, 128
        %v493 = vadd.s32 %v468, %v440
        %v494 = vadd.s32 %v469, %v440
        %v495 = vadd.s32 %v470, %v440
        %v496 = vadd.s32 %v471, %v440
        %v497 = vadd.s32 %v472, %v440
        %v498 = vadd.s32 %v473, %v440
        %v499 = vadd.s32 %v474, %v440
        %v500 = vadd.s32 %v475, %v440
        %v501 = vadd.s32 %v476, %v440
        %v502 = vadd.s32 %v477, %v440
        %v503 = vadd.s32 %v478, %v440
        %v504 = vadd.s32 %v479, %v440
        %v505 = vadd.s32 %v480, %v440
        %v506 = vadd.s32 %v481, %v440
        %v507 = vadd.s32 %v482, %v440
        %v508 = vadd.s32 %v483, %v440
        %v509 = vadd.s32 %v484, %v440
        %v510 = vadd.s32 %v485, %v440
        %v511 = vadd.s32 %v486, %v440
        %v512 = vadd.s32 %v487, %v440
        %v513 = vadd.s32 %v488, %v440
        %v514 = vadd.s32 %v489, %v440
        %v515 = vadd.s32 %v490, %v440
        %v516 = vadd.s32 %v491, %v440
        %v517 = vadd.s32 %v492, %v440
        %vm518 = vcmp.lt.s32.totalorder %v493, 50000
        %vm519 = vcmp.lt.s32.totalorder %v494, 50000
        %vm520 = vcmp.lt.s32.totalorder %v495, 50000
        %vm521 = vcmp.lt.s32.totalorder %v496, 50000
        %vm522 = vcmp.lt.s32.totalorder %v497, 50000
        %vm523 = vcmp.lt.s32.totalorder %v498, 50000
        %vm524 = vcmp.lt.s32.totalorder %v499, 50000
        %vm525 = vcmp.lt.s32.totalorder %v500, 50000
        %vm526 = vcmp.lt.s32.totalorder %v501, 50000
        %vm527 = vcmp.lt.s32.totalorder %v502, 50000
        %vm528 = vcmp.lt.s32.totalorder %v503, 50000
        %vm529 = vcmp.lt.s32.totalorder %v504, 50000
        %vm530 = vcmp.lt.s32.totalorder %v505, 50000
        %vm531 = vcmp.lt.s32.totalorder %v506, 50000
        %vm532 = vcmp.lt.s32.totalorder %v507, 50000
        %vm533 = vcmp.lt.s32.totalorder %v508, 50000
        %vm534 = vcmp.lt.s32.totalorder %v509, 50000
        %vm535 = vcmp.lt.s32.totalorder %v510, 50000
        %vm536 = vcmp.lt.s32.totalorder %v511, 50000
        %vm537 = vcmp.lt.s32.totalorder %v512, 50000
        %vm538 = vcmp.lt.s32.totalorder %v513, 50000
        %vm539 = vcmp.lt.s32.totalorder %v514, 50000
        %vm540 = vcmp.lt.s32.totalorder %v515, 50000
        %vm541 = vcmp.lt.s32.totalorder %v516, 50000
        %vm542 = vcmp.lt.s32.totalorder %v517, 50000
        %v543 = vsel %vm518, %v336, 0.0
        %v544 = vsel %vm519, %v337, 0.0
        %v545 = vsel %vm520, %v338, 0.0
        %v546 = vsel %vm521, %v339, 0.0
        %v547 = vsel %vm522, %v340, 0.0
        %v548 = vsel %vm523, %v341, 0.0
        %v549 = vsel %vm524, %v342, 0.0
        %v550 = vsel %vm525, %v343, 0.0
        %v551 = vsel %vm526, %v344, 0.0
        %v552 = vsel %vm527, %v345, 0.0
        %v553 = vsel %vm528, %v346, 0.0
        %v554 = vsel %vm529, %v347, 0.0
        %v555 = vsel %vm530, %v348, 0.0
        %v556 = vsel %vm531, %v349, 0.0
        %v557 = vsel %vm532, %v350, 0.0
        %v558 = vsel %vm533, %v351, 0.0
        %v559 = vsel %vm534, %v352, 0.0
        %v560 = vsel %vm535, %v353, 0.0
        %v561 = vsel %vm536, %v354, 0.0
        %v562 = vsel %vm537, %v355, 0.0
        %v563 = vsel %vm538, %v356, 0.0
        %v564 = vsel %vm539, %v357, 0.0
        %v565 = vsel %vm540, %v358, 0.0
        %v566 = vsel %vm541, %v359, 0.0
        %v567 = vsel %vm542, %v360, 0.0
        %v568 = vsel %vm518, %v388, 0.0
        %v569 = vsel %vm519, %v389, 0.0
        %v570 = vsel %vm520, %v390, 0.0
        %v571 = vsel %vm521, %v391, 0.0
        %v572 = vsel %vm522, %v392, 0.0
        %v573 = vsel %vm523, %v393, 0.0
        %v574 = vsel %vm524, %v394, 0.0
        %v575 = vsel %vm525, %v395, 0.0
        %v576 = vsel %vm526, %v396, 0.0
        %v577 = vsel %vm527, %v397, 0.0
        %v578 = vsel %vm528, %v398, 0.0
        %v579 = vsel %vm529, %v399, 0.0
        %v580 = vsel %vm530, %v400, 0.0
        %v581 = vsel %vm531, %v401, 0.0
        %v582 = vsel %vm532, %v402, 0.0
        %v583 = vsel %vm533, %v403, 0.0
        %v584 = vsel %vm534, %v404, 0.0
        %v585 = vsel %vm535, %v405, 0.0
        %v586 = vsel %vm536, %v406, 0.0
        %v587 = vsel %vm537, %v407, 0.0
        %v588 = vsel %vm538, %v408, 0.0
        %v589 = vsel %vm539, %v409, 0.0
        %v590 = vsel %vm540, %v410, 0.0
        %v591 = vsel %vm541, %v411, 0.0
        %v592 = vsel %vm542, %v412, 0.0
        %v593 = vadd.f32 %v543, %v544
        %v594 = vadd.f32 %v593, %v545
        %v595 = vadd.f32 %v594, %v546
        %v596 = vadd.f32 %v595, %v547
        %v597 = vadd.f32 %v596, %v548
        %v598 = vadd.f32 %v597, %v549
        %v599 = vadd.f32 %v598, %v550
        %v600 = vadd.f32 %v599, %v551
        %v601 = vadd.f32 %v600, %v552
        %v602 = vadd.f32 %v601, %v553
        %v603 = vadd.f32 %v602, %v554
        %v604 = vadd.f32 %v603, %v555
        %v605 = vadd.f32 %v604, %v556
        %v606 = vadd.f32 %v605, %v557
        %v607 = vadd.f32 %v606, %v558
        %v608 = vadd.f32 %v607, %v559
        %v609 = vadd.f32 %v608, %v560
        %v610 = vadd.f32 %v609, %v561
        %v611 = vadd.f32 %v610, %v562
        %v612 = vadd.f32 %v611, %v563
        %v613 = vadd.f32 %v612, %v564
        %v614 = vadd.f32 %v613, %v565
        %v615 = vadd.f32 %v614, %v566
        %v616 = vadd.f32 %v615, %v567
        %v617 = vadd.f32 %v568, %v569
        %v618 = vadd.f32 %v617, %v570
        %v619 = vadd.f32 %v618, %v571
        %v620 = vadd.f32 %v619, %v572
        %v621 = vadd.f32 %v620, %v573
        %v622 = vadd.f32 %v621, %v574
        %v623 = vadd.f32 %v622, %v575
        %v624 = vadd.f32 %v623, %v576
        %v625 = vadd.f32 %v624, %v577
        %v626 = vadd.f32 %v625, %v578
        %v627 = vadd.f32 %v626, %v579
        %v628 = vadd.f32 %v627, %v580
        %v629 = vadd.f32 %v628, %v581
        %v630 = vadd.f32 %v629, %v582
        %v631 = vadd.f32 %v630, %v583
        %v632 = vadd.f32 %v631, %v584
        %v633 = vadd.f32 %v632, %v585
        %v634 = vadd.f32 %v633, %v586
        %v635 = vadd.f32 %v634, %v587
        %v636 = vadd.f32 %v635, %v588
        %v637 = vadd.f32 %v636, %v589
        %v638 = vadd.f32 %v637, %v590
        %v639 = vadd.f32 %v638, %v591
        %v640 = vadd.f32 %v639, %v592
        %v641 = vmul.f32 %v543, %v543
        %v642 = vmul.f32 %v544, %v544
        %v643 = vmul.f32 %v545, %v545
        %v644 = vmul.f32 %v546, %v546
        %v645 = vmul.f32 %v547, %v547
        %v646 = vmul.f32 %v548, %v548
        %v647 = vmul.f32 %v549, %v549
        %v648 = vmul.f32 %v550, %v550
        %v649 = vmul.f32 %v551, %v551
        %v650 = vmul.f32 %v552, %v552
        %v651 = vmul.f32 %v553, %v553
        %v652 = vmul.f32 %v554, %v554
        %v653 = vmul.f32 %v555, %v555
        %v654 = vmul.f32 %v556, %v556
        %v655 = vmul.f32 %v557, %v557
        %v656 = vmul.f32 %v558, %v558
        %v657 = vmul.f32 %v559, %v559
        %v658 = vmul.f32 %v560, %v560
        %v659 = vmul.f32 %v561, %v561
        %v660 = vmul.f32 %v562, %v562
        %v661 = vmul.f32 %v563, %v563
        %v662 = vmul.f32 %v564, %v564
        %v663 = vmul.f32 %v565, %v565
        %v664 = vmul.f32 %v566, %v566
        %v665 = vmul.f32 %v567, %v567
        %v666 = vadd.f32 %v641, %v642
        %v667 = vadd.f32 %v666, %v643
        %v668 = vadd.f32 %v667, %v644
        %v669 = vadd.f32 %v668, %v645
        %v670 = vadd.f32 %v669, %v646
        %v671 = vadd.f32 %v670, %v647
        %v672 = vadd.f32 %v671, %v648
        %v673 = vadd.f32 %v672, %v649
        %v674 = vadd.f32 %v673, %v650
        %v675 = vadd.f32 %v674, %v651
        %v676 = vadd.f32 %v675, %v652
        %v677 = vadd.f32 %v676, %v653
        %v678 = vadd.f32 %v677, %v654
        %v679 = vadd.f32 %v678, %v655
        %v680 = vadd.f32 %v679, %v656
        %v681 = vadd.f32 %v680, %v657
        %v682 = vadd.f32 %v681, %v658
        %v683 = vadd.f32 %v682, %v659
        %v684 = vadd.f32 %v683, %v660
        %v685 = vadd.f32 %v684, %v661
        %v686 = vadd.f32 %v685, %v662
        %v687 = vadd.f32 %v686, %v663
        %v688 = vadd.f32 %v687, %v664
        %v689 = vadd.f32 %v688, %v665
        %v690 = vmul.f32 %v568, %v568
        %v691 = vmul.f32 %v569, %v569
        %v692 = vmul.f32 %v570, %v570
        %v693 = vmul.f32 %v571, %v571
        %v694 = vmul.f32 %v572, %v572
        %v695 = vmul.f32 %v573, %v573
        %v696 = vmul.f32 %v574, %v574
        %v697 = vmul.f32 %v575, %v575
        %v698 = vmul.f32 %v576, %v576
        %v699 = vmul.f32 %v577, %v577
        %v700 = vmul.f32 %v578, %v578
        %v701 = vmul.f32 %v579, %v579
        %v702 = vmul.f32 %v580, %v580
        %v703 = vmul.f32 %v581, %v581
        %v704 = vmul.f32 %v582, %v582
        %v705 = vmul.f32 %v583, %v583
        %v706 = vmul.f32 %v584, %v584
        %v707 = vmul.f32 %v585, %v585
        %v708 = vmul.f32 %v586, %v586
        %v709 = vmul.f32 %v587, %v587
        %v710 = vmul.f32 %v588, %v588
        %v711 = vmul.f32 %v589, %v589
        %v712 = vmul.f32 %v590, %v590
        %v713 = vmul.f32 %v591, %v591
        %v714 = vmul.f32 %v592, %v592
        %v715 = vadd.f32 %v690, %v691
        %v716 = vadd.f32 %v715, %v692
        %v717 = vadd.f32 %v716, %v693
        %v718 = vadd.f32 %v717, %v694
        %v719 = vadd.f32 %v718, %v695
        %v720 = vadd.f32 %v719, %v696
        %v721 = vadd.f32 %v720, %v697
        %v722 = vadd.f32 %v721, %v698
        %v723 = vadd.f32 %v722, %v699
        %v724 = vadd.f32 %v723, %v700
        %v725 = vadd.f32 %v724, %v701
        %v726 = vadd.f32 %v725, %v702
        %v727 = vadd.f32 %v726, %v703
        %v728 = vadd.f32 %v727, %v704
        %v729 = vadd.f32 %v728, %v705
        %v730 = vadd.f32 %v729, %v706
        %v731 = vadd.f32 %v730, %v707
        %v732 = vadd.f32 %v731, %v708
        %v733 = vadd.f32 %v732, %v709
        %v734 = vadd.f32 %v733, %v710
        %v735 = vadd.f32 %v734, %v711
        %v736 = vadd.f32 %v735, %v712
        %v737 = vadd.f32 %v736, %v713
        %v738 = vadd.f32 %v737, %v714
        %v739 = vmul.f32 %v543, %v568
        %v740 = vmul.f32 %v544, %v569
        %v741 = vmul.f32 %v545, %v570
        %v742 = vmul.f32 %v546, %v571
        %v743 = vmul.f32 %v547, %v572
        %v744 = vmul.f32 %v548, %v573
        %v745 = vmul.f32 %v549, %v574
        %v746 = vmul.f32 %v550, %v575
        %v747 = vmul.f32 %v551, %v576
        %v748 = vmul.f32 %v552, %v577
        %v749 = vmul.f32 %v553, %v578
        %v750 = vmul.f32 %v554, %v579
        %v751 = vmul.f32 %v555, %v580
        %v752 = vmul.f32 %v556, %v581
        %v753 = vmul.f32 %v557, %v582
        %v754 = vmul.f32 %v558, %v583
        %v755 = vmul.f32 %v559, %v584
        %v756 = vmul.f32 %v560, %v585
        %v757 = vmul.f32 %v561, %v586
        %v758 = vmul.f32 %v562, %v587
        %v759 = vmul.f32 %v563, %v588
        %v760 = vmul.f32 %v564, %v589
        %v761 = vmul.f32 %v565, %v590
        %v762 = vmul.f32 %v566, %v591
        %v763 = vmul.f32 %v567, %v592
        %v764 = vadd.f32 %v739, %v740
        %v765 = vadd.f32 %v764, %v741
        %v766 = vadd.f32 %v765, %v742
        %v767 = vadd.f32 %v766, %v743
        %v768 = vadd.f32 %v767, %v744
        %v769 = vadd.f32 %v768, %v745
        %v770 = vadd.f32 %v769, %v746
        %v771 = vadd.f32 %v770, %v747
        %v772 = vadd.f32 %v771, %v748
        %v773 = vadd.f32 %v772, %v749
        %v774 = vadd.f32 %v773, %v750
        %v775 = vadd.f32 %v774, %v751
        %v776 = vadd.f32 %v775, %v752
        %v777 = vadd.f32 %v776, %v753
        %v778 = vadd.f32 %v777, %v754
        %v779 = vadd.f32 %v778, %v755
        %v780 = vadd.f32 %v779, %v756
        %v781 = vadd.f32 %v780, %v757
        %v782 = vadd.f32 %v781, %v758
        %v783 = vadd.f32 %v782, %v759
        %v784 = vadd.f32 %v783, %v760
        %v785 = vadd.f32 %v784, %v761
        %v786 = vadd.f32 %v785, %v762
        %v787 = vadd.f32 %v786, %v763
        %v788 = vld [vmem:[%s282] sm:$0xff]
        %v789 = vld [vmem:[%s282 + $0x8] sm:$0xff]
        %v790 = vld [vmem:[%s282 + $0x10] sm:$0xff]
        %v791 = vld [vmem:[%s282 + $0x18] sm:$0xff]
        %v792 = vld [vmem:[%s282 + $0x20] sm:$0xff]
        %v793 = vadd.f32 %v788, %v616
        %v794 = vadd.f32 %v789, %v640
        %v795 = vadd.f32 %v790, %v689
        %v796 = vadd.f32 %v791, %v738
        %v797 = vadd.f32 %v792, %v787
        %798 = vst [vmem:[%s282] sm:$0xff] %v793
        %799 = vst [vmem:[%s282 + $0x8] sm:$0xff] %v794
        %800 = vst [vmem:[%s282 + $0x10] sm:$0xff] %v795
        %801 = vst [vmem:[%s282 + $0x18] sm:$0xff] %v796
        %802 = vst [vmem:[%s282 + $0x20] sm:$0xff] %v797
        %s803 = sand.u32 %s129, 1
        %s804 = scalar_lea.sflag [#allocation4], %s803
        %s805 = sand.u32 %s129, 1
        %s806 = smul.addr %s805, 40
        %s807 = scalar_lea.vmem [#allocation9], %s806
        // Predicated region
        $region49: #{tpu_custom_call.1} parent=31 // pred_check
          %p808 = pneg %p139
        $region50: #{tpu_custom_call.1} parent=31 // pred_check_branch
          %810 = sbr.rel (%p808) target = $region52
        $region51: #{tpu_custom_call.1} parent=31 // pred_region
          %s812 = ssub.s32 640, 640
          %813 = vsyncadd %s804, %s812
          %s814 = smul.addr %s28, 5
          %s815 = smul.addr %s814, 128
          %s816 = scalar_lea.hbm %s3, %s815
          %s817 = sshll.u32 %s807, 4
          %s818 = int_to_ptr.vmem [resolvable:$true] %s817
          %823 = dma.vmem_to_hbm [thread:$0]  %s818, 640, %s816, %s804, 128, 128, 8
        $region52: #{tpu_custom_call.1} parent=31 // pred_fallthru
          _
      $region32: #{tpu_custom_call.1} parent=5 // pred_fallthru
        _
      %p824 = scmp.le.s32.totalorder 2, %s19
      // Predicated region
      $region53: #{tpu_custom_call.1} parent=5 // pred_check
        %p825 = pneg %p824
      $region54: #{tpu_custom_call.1} parent=5 // pred_check_branch
        %827 = sbr.rel (%p825) target = $region56
      $region55: #{tpu_custom_call.1} parent=5 // pred_region
        %s828 = ssub.s32 %s19, 2
        // Predicated region
        $region57: #{tpu_custom_call.1} parent=55 // pred_check
          %p829 = pneg %p145
        $region58: #{tpu_custom_call.1} parent=55 // pred_check_branch
          %831 = sbr.rel (%p829) target = $region60
        $region59: #{tpu_custom_call.1} parent=55 // pred_region
          %s832 = sand.u32 %s130, 1
          %s833 = scalar_lea.sflag [#allocation4], %s832
          %s834 = sand.u32 %s130, 1
          %s835 = smul.addr %s834, 40
          %s836 = scalar_lea.vmem [#allocation9], %s835
          %837 = dma.done %s833, 640
        $region60: #{tpu_custom_call.1} parent=55 // pred_fallthru
          _
      $region56: #{tpu_custom_call.1} parent=5 // pred_fallthru
        _
    $region6: #{tpu_custom_call.1} parent=1 // loop_footer
      %s23 = sadd.s32 1, %s19
    $region7: #{tpu_custom_call.1} parent=1 // loop_footer_branch
      %18 = sbr.rel target = $region3
    $region8: #{tpu_custom_call.1} parent=1 // loop_exit
      _
    %838 = vsyncpa [#allocation3], 1
    %s839 = scalar_lea.sflag [#allocation3], 1
    %840 = vsyncpa %s839, 1
    %841 = vsyncpa [#allocation8], 1
    %s842 = scalar_lea.sflag [#allocation8], 1
    %843 = vsyncpa %s842, 1
    %844 = vsyncpa [#allocation4], 1
    %s845 = scalar_lea.sflag [#allocation4], 1
    %846 = vsyncpa %s845, 1
    %847 = vsyncpa [#allocation5], 1
    %s848 = scalar_lea.sflag [#allocation5], 1
    %849 = vsyncpa %s848, 1

</llo_original>
